<compile_context>
chip_gen: v6e
topology: v6e:2x2x1
jax: 0.10.0
libtpu: 0.0.40
codegen_flags: <defaults>
</compile_context>

<pallas_src>
import functools

import jax
import jax.numpy as jnp
from jax import lax
from jax.experimental import pallas as pl
from jax.experimental.pallas import tpu as pltpu

EPS = 1e-5
MOMENTUM = 0.1


# ---------------------------------------------------------------------------
# Kernel 1: per-(batch, core-split) partial reductions over the spatial axis.
# ---------------------------------------------------------------------------
def _center_partial_kernel(hw, t, jc, need_mask,
                           feat_ref, mask_ref, fs_ref, ms_ref, mm_ref):
    """feat_ref: (C, t)  mask_ref: (K, t)
       fs_ref:   (C, K)  ms_ref/mm_ref: (K, 1) -- resident over the j axis."""
    c = pl.program_id(1)
    j = pl.program_id(2)

    @pl.when(j == 0)
    def _():
        fs_ref[...] = jnp.zeros_like(fs_ref)
        ms_ref[...] = jnp.zeros_like(ms_ref)
        # Exact max identity (correct even for negative masks).
        mm_ref[...] = jnp.full(mm_ref.shape, -jnp.inf, dtype=mm_ref.dtype)

    f = feat_ref[...]                                    # (C, t)
    m = mask_ref[...]                                    # (K, t)

    if need_mask:
        # Unclamped logical offset: fully masks phantom blocks of the core
        # split and the out-of-range lanes of the tail block.
        start = (c * jc + j) * t
        lane = lax.broadcasted_iota(jnp.int32, (1, t), 1)
        valid = (start + lane) < hw
        f = jnp.where(valid, f, 0.0)
        m_max = jnp.where(valid, m, -jnp.inf)
        m = jnp.where(valid, m, 0.0)
    else:
        m_max = m

    # Contract on the shared last (lane) axis: (C, t) x (K, t) -> (C, K).
    # The operand Mosaic has to transpose for the MXU is the small mask tile,
    # not the big feat tile.
    fs_ref[...] += lax.dot_general(
        f, m, (((1,), (1,)), ((), ())), preferred_element_type=jnp.float32)
    ms_ref[...] += jnp.sum(m, axis=-1, keepdims=True)
    mm_ref[...] = jnp.maximum(mm_ref[...],
                              jnp.max(m_max, axis=-1, keepdims=True))


# ---------------------------------------------------------------------------
# Kernel 2: out tile (C, t) = center^T (C, K) @ mask tile (K, t).
# ---------------------------------------------------------------------------
def _project_kernel(center_t_ref, mask_ref, out_ref):
    out_ref[...] = jnp.dot(center_t_ref[...], mask_ref[...],
                           preferred_element_type=jnp.float32)


# ---------------------------------------------------------------------------
# Static (trace-time) configuration helpers.
# ---------------------------------------------------------------------------
def _chip_config():
    """Chip-aware VMEM cap, per-step byte target, and TensorCore split."""
    vmem_phys = None
    try:
        vmem_phys = int(pltpu.get_tpu_info().vmem_capacity_bytes)
    except Exception:
        pass
    if vmem_phys is None:
        kind = ""
        try:
            kind = jax.devices()[0].device_kind.lower()
        except Exception:
            pass
        vmem_phys = (64 << 20) if "7" in kind else (128 << 20)
    if vmem_phys <= (80 << 20):
        # 64-MiB-VMEM class (v7x): 2 TensorCores, very high HBM bandwidth.
        return {"vmem_cap": 48 << 20, "target_step_bytes": 8 << 20, "split": 2}
    # 128-MiB-VMEM class (v5e / v6e): single TensorCore.
    return {"vmem_cap": 96 << 20, "target_step_bytes": 4 << 20, "split": 1}


def _pick_tile(hw, c, k, vmem_cap, target_step_bytes):
    """VMEM-budget-driven spatial tile: multiple of 128, or the full HW."""
    lane_bytes = 4 * (c + k)                 # f32 feat+mask (or mask+out) per lane
    resident = 4 * (c * k + 2 * k)           # tiny resident partials
    headroom = 4 << 20
    t_vmem = (vmem_cap - resident - headroom) // (2 * lane_bytes)  # dbl-buffered
    t = min(t_vmem, target_step_bytes // lane_bytes)
    t = max((t // 128) * 128, 128)
    if t >= hw:
        return hw                            # full-extent block (always legal)
    return t


def _vmem_limit(data_bytes, cap):
    return int(min(max(data_bytes + (4 << 20), 32 << 20), cap))


# ---------------------------------------------------------------------------
# Forward pass.
# ---------------------------------------------------------------------------
@functools.partial(jax.jit,
                   static_argnames=("t", "num_j", "jc", "split", "vmem_cap"))
def _forward_impl(input_feat, input_mask, weight, bias, running_center,
                  *, t, num_j, jc, split, vmem_cap):
    B, C, H, W = input_feat.shape
    K = input_mask.shape[1]
    HW = H * W
    f32 = jnp.float32

    # NCHW-native flattening (free reshapes, no HBM transposes).
    feat = input_feat.reshape(B, C, HW)
    mask = input_mask.reshape(B, K, HW)

    need_mask = (num_j * t != HW) or (split * jc != num_j)
    kern1 = functools.partial(_center_partial_kernel, HW, t, jc, need_mask)

    if split * jc == num_j:
        sp_map = lambda b, c, j: (b, 0, c * jc + j)
    else:
        # Clamp the phantom block of the core split; the kernel masks it out.
        sp_map = lambda b, c, j: (b, 0, jnp.minimum(c * jc + j, num_j - 1))

    cost1 = pl.CostEstimate(
        flops=2 * B * HW * (K * C + K),
        transcendentals=0,
        bytes_accessed=4 * (B * HW * (C + K) + B * split * (C * K + 2 * K)))

    # --- kernel 1: per-(batch, core-split) partial feat_sum/mask_sum/max ---
    part_fs, part_ms, part_mm = pl.pallas_call(
        kern1,
        out_shape=(jax.ShapeDtypeStruct((B, split, C, K), f32),
                   jax.ShapeDtypeStruct((B, split, K, 1), f32),
                   jax.ShapeDtypeStruct((B, split, K, 1), f32)),
        grid_spec=pltpu.PrefetchScalarGridSpec(
            num_scalar_prefetch=0,
            grid=(B, split, jc),
            in_specs=[
                pl.BlockSpec((None, C, t), sp_map),    # feat
                pl.BlockSpec((None, K, t), sp_map),    # mask
            ],
            out_specs=[
                pl.BlockSpec((None, None, C, K), lambda b, c, j: (b, c, 0, 0)),
                pl.BlockSpec((None, None, K, 1), lambda b, c, j: (b, c, 0, 0)),
                pl.BlockSpec((None, None, K, 1), lambda b, c, j: (b, c, 0, 0)),
            ],
        ),
        compiler_params=pltpu.CompilerParams(
            dimension_semantics=("parallel", "parallel", "arbitrary"),
            vmem_limit_bytes=_vmem_limit(
                2 * 4 * ((C + K) * t + C * K + 2 * K), vmem_cap)),
        cost_estimate=cost1,
    )(feat, mask)

    # --- tiny (K, C) finalization: center, running-center EMA, affine ------
    feat_sum = jnp.sum(part_fs, axis=(0, 1)).T               # (K, C)
    mask_sum = jnp.sum(part_ms, axis=(0, 1))                 # (K, 1)
    mask_max = jnp.max(part_mm, axis=(0, 1))                 # (K, 1)
    feat_center = feat_sum / (mask_sum + EPS)
    momentum = MOMENTUM * mask_max
    new_running = running_center * (1.0 - momentum) + momentum * feat_center
    center_aff = feat_center * weight + bias
    center_t = center_aff.T                                  # (C, K), tiny

    # --- kernel 2: out (B, C, HW) = center^T @ mask, tiled over B x HW -----
    cost2 = pl.CostEstimate(
        flops=2 * B * HW * K * C,
        transcendentals=0,
        bytes_accessed=4 * (B * HW * (K + C) + C * K))

    out_flat = pl.pallas_call(
        _project_kernel,
        out_shape=jax.ShapeDtypeStruct((B, C, HW), f32),
        grid_spec=pltpu.PrefetchScalarGridSpec(
            num_scalar_prefetch=0,
            grid=(B, num_j),
            in_specs=[
                pl.BlockSpec((C, K), lambda b, j: (0, 0)),            # center^T
                pl.BlockSpec((None, K, t), lambda b, j: (b, 0, j)),   # mask
            ],
            out_specs=pl.BlockSpec((None, C, t), lambda b, j: (b, 0, j)),
        ),
        compiler_params=pltpu.CompilerParams(
            dimension_semantics=("parallel", "parallel"),
            vmem_limit_bytes=_vmem_limit(
                2 * 4 * ((C + K) * t + C * K), vmem_cap)),
        cost_estimate=cost2,
    )(center_t, mask)

    return out_flat.reshape(B, C, H, W), new_running


def sync_category_center_forward(input_feat, input_mask, weight, bias,
                                 running_center):
    """Training-mode forward of SyncCategoryCenter (single device).

    input_feat: (B, C, H, W) f32   input_mask: (B, K, H, W) f32
    weight/bias/running_center: (K, C)
    Returns (out_feat (B, C, H, W), new_running_center (K, C)).
    """
    B, C, H, W = input_feat.shape
    K = input_mask.shape[1]
    HW = H * W
    cfg = _chip_config()
    t = _pick_tile(HW, C, K, cfg["vmem_cap"], cfg["target_step_bytes"])
    num_j = -(-HW // t)                          # cdiv, no divisor requirement
    split = cfg["split"] if num_j >= 2 else 1
    jc = -(-num_j // split)
    return _forward_impl(input_feat, input_mask, weight, bias, running_center,
                         t=t, num_j=num_j, jc=jc, split=split,
                         vmem_cap=cfg["vmem_cap"])


def _reference_forward(input_feat, input_mask, weight, bias, running_center):
    """Pure-JAX mirror of the PyTorch training forward (for verification)."""
    B, C, H, W = input_feat.shape
    K = input_mask.shape[1]
    N = B * H * W
    mask = jnp.transpose(input_mask, (1, 0, 2, 3)).reshape(K, N)
    feat = jnp.transpose(input_feat, (1, 0, 2, 3)).reshape(C, N).T
    feat_sum = mask @ feat
    mask_sum = jnp.sum(mask, axis=-1, keepdims=True)
    mask_max = jnp.max(mask, axis=-1, keepdims=True)
    feat_center = feat_sum / (mask_sum + EPS)
    momentum = MOMENTUM * mask_max
    new_running = running_center * (1.0 - momentum) + momentum * feat_center
    feat_center = feat_center * weight + bias
    out = (feat_center.T @ mask).reshape(C, B, H, W)
    return jnp.transpose(out, (1, 0, 2, 3)), new_running


if __name__ == "__main__":
    # Small, module-consistent shapes: batch=2, num_features=8, num_category=4,
    # spatial 16x16.
    B, C, K, H, W = 2, 8, 4, 16, 16

    key = jax.random.PRNGKey(0)
    k_feat, k_mask = jax.random.split(key)
    input_feat = jax.random.normal(k_feat, (B, C, H, W), dtype=jnp.float32)
    # Soft category assignments in [0, 1] (softmax-like masks).
    logits = jax.random.normal(k_mask, (B, K, H, W), dtype=jnp.float32)
    input_mask = jax.nn.softmax(logits, axis=1)

    # Deterministic parameter init exactly as CategoryCenter.reset_parameters():
    weight = jnp.ones((K, C), dtype=jnp.float32)
    bias = jnp.zeros((K, C), dtype=jnp.float32)
    running_center = jnp.zeros((K, C), dtype=jnp.float32)

    out_feat, new_running = sync_category_center_forward(
        input_feat, input_mask, weight, bias, running_center)
    jax.block_until_ready(out_feat)
    jax.block_until_ready(new_running)

    ref_out, ref_running = _reference_forward(
        input_feat, input_mask, weight, bias, running_center)
    assert jnp.allclose(out_feat, ref_out, atol=1e-4, rtol=1e-4)
    assert jnp.allclose(new_running, ref_running, atol=1e-5, rtol=1e-4)

    print("KERNEL_OK")
</pallas_src>

<mosaic_0001>
module attributes {stable_mosaic.version = 11 : i64} {
  func.func @_center_partial_kernel(%arg0: i32, %arg1: i32, %arg2: i32, %arg3: memref<1x8x256xf32, #tpu.memory_space<vmem>>, %arg4: memref<1x4x256xf32, #tpu.memory_space<vmem>>, %arg5: memref<1x1x8x4xf32, #tpu.memory_space<vmem>>, %arg6: memref<1x1x4x1xf32, #tpu.memory_space<vmem>>, %arg7: memref<1x1x4x1xf32, #tpu.memory_space<vmem>>) attributes {dimension_semantics = [#tpu.dimension_semantics<parallel>, #tpu.dimension_semantics<parallel>, #tpu.dimension_semantics<arbitrary>], iteration_bounds = array<i64: 2, 1, 1>, scalar_prefetch = 0 : i64, scratch_operands = 0 : i64, tpu.core_type = #tpu.core_type<tc>, window_params = [{transform_indices = @transform_0, window_bounds = array<i64: 1, 8, 256>}, {transform_indices = @transform_1, window_bounds = array<i64: 1, 4, 256>}, {transform_indices = @transform_2, window_bounds = array<i64: 1, 1, 8, 4>}, {transform_indices = @transform_3, window_bounds = array<i64: 1, 1, 4, 1>}, {transform_indices = @transform_4, window_bounds = array<i64: 1, 1, 4, 1>}]} {
    %c0_i32 = arith.constant 0 : i32
    %0 = arith.cmpi eq, %arg2, %c0_i32 : i32
    %1 = arith.extui %0 : i1 to i32
    %c0_i32_0 = arith.constant 0 : i32
    %2 = arith.cmpi ne, %1, %c0_i32_0 : i32
    scf.if %2 {
      %cst_32 = arith.constant 0.000000e+00 : f32
      %30 = vector.broadcast %cst_32 : f32 to vector<8x4xf32>
      %c0_33 = arith.constant 0 : index
      %c0_34 = arith.constant 0 : index
      %c0_35 = arith.constant 0 : index
      %c0_36 = arith.constant 0 : index
      %31 = vector.load %arg5[%c0_33, %c0_34, %c0_35, %c0_36] : memref<1x1x8x4xf32, #tpu.memory_space<vmem>>, vector<1x1x8x4xf32>
      %32 = vector.shape_cast %31 : vector<1x1x8x4xf32> to vector<8x4xf32>
      %33 = vector.shape_cast %30 : vector<8x4xf32> to vector<1x1x8x4xf32>
      tpu.vector_store %arg5[%c0_33, %c0_34, %c0_35, %c0_36], %33 {strides = array<i32>} : memref<1x1x8x4xf32, #tpu.memory_space<vmem>>, vector<1x1x8x4xf32>,
      %cst_37 = arith.constant 0.000000e+00 : f32
      %34 = vector.broadcast %cst_37 : f32 to vector<4x1xf32>
      %c0_38 = arith.constant 0 : index
      %c0_39 = arith.constant 0 : index
      %c0_40 = arith.constant 0 : index
      %c0_41 = arith.constant 0 : index
      %35 = vector.load %arg6[%c0_38, %c0_39, %c0_40, %c0_41] : memref<1x1x4x1xf32, #tpu.memory_space<vmem>>, vector<1x1x4x1xf32>
      %36 = vector.shape_cast %35 : vector<1x1x4x1xf32> to vector<4x1xf32>
      %37 = vector.shape_cast %34 : vector<4x1xf32> to vector<1x1x4x1xf32>
      tpu.vector_store %arg6[%c0_38, %c0_39, %c0_40, %c0_41], %37 {strides = array<i32>} : memref<1x1x4x1xf32, #tpu.memory_space<vmem>>, vector<1x1x4x1xf32>,
      %cst_42 = arith.constant 0xFF800000 : f32
      %38 = vector.broadcast %cst_42 : f32 to vector<4x1xf32>
      %c0_43 = arith.constant 0 : index
      %c0_44 = arith.constant 0 : index
      %c0_45 = arith.constant 0 : index
      %c0_46 = arith.constant 0 : index
      %39 = vector.load %arg7[%c0_43, %c0_44, %c0_45, %c0_46] : memref<1x1x4x1xf32, #tpu.memory_space<vmem>>, vector<1x1x4x1xf32>
      %40 = vector.shape_cast %39 : vector<1x1x4x1xf32> to vector<4x1xf32>
      %41 = vector.shape_cast %38 : vector<4x1xf32> to vector<1x1x4x1xf32>
      tpu.vector_store %arg7[%c0_43, %c0_44, %c0_45, %c0_46], %41 {strides = array<i32>} : memref<1x1x4x1xf32, #tpu.memory_space<vmem>>, vector<1x1x4x1xf32>,
    } else {
    }
    %c0 = arith.constant 0 : index
    %c0_1 = arith.constant 0 : index
    %c0_2 = arith.constant 0 : index
    %3 = vector.load %arg3[%c0, %c0_1, %c0_2] : memref<1x8x256xf32, #tpu.memory_space<vmem>>, vector<1x8x256xf32>
    %4 = vector.shape_cast %3 : vector<1x8x256xf32> to vector<8x256xf32>
    %c0_3 = arith.constant 0 : index
    %c0_4 = arith.constant 0 : index
    %c0_5 = arith.constant 0 : index
    %5 = vector.load %arg4[%c0_3, %c0_4, %c0_5] : memref<1x4x256xf32, #tpu.memory_space<vmem>>, vector<1x4x256xf32>
    %6 = vector.shape_cast %5 : vector<1x4x256xf32> to vector<4x256xf32>
    %c0_6 = arith.constant 0 : index
    %c0_7 = arith.constant 0 : index
    %c0_8 = arith.constant 0 : index
    %c0_9 = arith.constant 0 : index
    %7 = vector.load %arg5[%c0_6, %c0_7, %c0_8, %c0_9] : memref<1x1x8x4xf32, #tpu.memory_space<vmem>>, vector<1x1x8x4xf32>
    %8 = vector.shape_cast %7 : vector<1x1x8x4xf32> to vector<8x4xf32>
    %cst = arith.constant dense<0.000000e+00> : vector<8x4xf32>
    %9 = tpu.matmul %4, %6, %cst {dimension_numbers = #tpu.dot_dimension_numbers<[1], [1], [0], [0], [0, 0, 1, 0], [], []>} : vector<8x256xf32>, vector<4x256xf32>, vector<8x4xf32> -> vector<8x4xf32>
    %10 = arith.addf %8, %9 : vector<8x4xf32>
    %c0_10 = arith.constant 0 : index
    %c0_11 = arith.constant 0 : index
    %c0_12 = arith.constant 0 : index
    %c0_13 = arith.constant 0 : index
    %11 = vector.load %arg5[%c0_10, %c0_11, %c0_12, %c0_13] : memref<1x1x8x4xf32, #tpu.memory_space<vmem>>, vector<1x1x8x4xf32>
    %12 = vector.shape_cast %11 : vector<1x1x8x4xf32> to vector<8x4xf32>
    %13 = vector.shape_cast %10 : vector<8x4xf32> to vector<1x1x8x4xf32>
    tpu.vector_store %arg5[%c0_10, %c0_11, %c0_12, %c0_13], %13 {strides = array<i32>} : memref<1x1x8x4xf32, #tpu.memory_space<vmem>>, vector<1x1x8x4xf32>,
    %c0_14 = arith.constant 0 : index
    %c0_15 = arith.constant 0 : index
    %c0_16 = arith.constant 0 : index
    %c0_17 = arith.constant 0 : index
    %14 = vector.load %arg6[%c0_14, %c0_15, %c0_16, %c0_17] : memref<1x1x4x1xf32, #tpu.memory_space<vmem>>, vector<1x1x4x1xf32>
    %15 = vector.shape_cast %14 : vector<1x1x4x1xf32> to vector<4x1xf32>
    %cst_18 = arith.constant dense<0.000000e+00> : vector<4xf32>
    %16 = vector.multi_reduction <add>, %6, %cst_18 [1] : vector<4x256xf32> to vector<4xf32>
    %17 = vector.shape_cast %16 : vector<4xf32> to vector<4x1xf32>
    %18 = arith.addf %15, %17 : vector<4x1xf32>
    %c0_19 = arith.constant 0 : index
    %c0_20 = arith.constant 0 : index
    %c0_21 = arith.constant 0 : index
    %c0_22 = arith.constant 0 : index
    %19 = vector.load %arg6[%c0_19, %c0_20, %c0_21, %c0_22] : memref<1x1x4x1xf32, #tpu.memory_space<vmem>>, vector<1x1x4x1xf32>
    %20 = vector.shape_cast %19 : vector<1x1x4x1xf32> to vector<4x1xf32>
    %21 = vector.shape_cast %18 : vector<4x1xf32> to vector<1x1x4x1xf32>
    tpu.vector_store %arg6[%c0_19, %c0_20, %c0_21, %c0_22], %21 {strides = array<i32>} : memref<1x1x4x1xf32, #tpu.memory_space<vmem>>, vector<1x1x4x1xf32>,
    %c0_23 = arith.constant 0 : index
    %c0_24 = arith.constant 0 : index
    %c0_25 = arith.constant 0 : index
    %c0_26 = arith.constant 0 : index
    %22 = vector.load %arg7[%c0_23, %c0_24, %c0_25, %c0_26] : memref<1x1x4x1xf32, #tpu.memory_space<vmem>>, vector<1x1x4x1xf32>
    %23 = vector.shape_cast %22 : vector<1x1x4x1xf32> to vector<4x1xf32>
    %cst_27 = arith.constant dense<0xFF800000> : vector<4xf32>
    %24 = vector.multi_reduction <maximumf>, %6, %cst_27 [1] : vector<4x256xf32> to vector<4xf32>
    %25 = vector.shape_cast %24 : vector<4xf32> to vector<4x1xf32>
    %26 = arith.maximumf %23, %25 : vector<4x1xf32>
    %c0_28 = arith.constant 0 : index
    %c0_29 = arith.constant 0 : index
    %c0_30 = arith.constant 0 : index
    %c0_31 = arith.constant 0 : index
    %27 = vector.load %arg7[%c0_28, %c0_29, %c0_30, %c0_31] : memref<1x1x4x1xf32, #tpu.memory_space<vmem>>, vector<1x1x4x1xf32>
    %28 = vector.shape_cast %27 : vector<1x1x4x1xf32> to vector<4x1xf32>
    %29 = vector.shape_cast %26 : vector<4x1xf32> to vector<1x1x4x1xf32>
    tpu.vector_store %arg7[%c0_28, %c0_29, %c0_30, %c0_31], %29 {strides = array<i32>} : memref<1x1x4x1xf32, #tpu.memory_space<vmem>>, vector<1x1x4x1xf32>,
    return
  }
  func.func @transform_0(%arg0: i32, %arg1: i32, %arg2: i32) -> (i32, i32, i32) {
    %c1_i32 = arith.constant 1 : i32
    %0 = arith.muli %arg1, %c1_i32 : i32
    %1 = arith.addi %0, %arg2 : i32
    %c0_i32 = arith.constant 0 : i32
    %c0_i32_0 = arith.constant 0 : i32
    return %arg0, %c0_i32, %1 : i32, i32, i32
  }
  func.func @transform_1(%arg0: i32, %arg1: i32, %arg2: i32) -> (i32, i32, i32) {
    %c1_i32 = arith.constant 1 : i32
    %0 = arith.muli %arg1, %c1_i32 : i32
    %1 = arith.addi %0, %arg2 : i32
    %c0_i32 = arith.constant 0 : i32
    %c0_i32_0 = arith.constant 0 : i32
    return %arg0, %c0_i32, %1 : i32, i32, i32
  }
  func.func @transform_2(%arg0: i32, %arg1: i32, %arg2: i32) -> (i32, i32, i32, i32) {
    %c0_i32 = arith.constant 0 : i32
    %c0_i32_0 = arith.constant 0 : i32
    %c0_i32_1 = arith.constant 0 : i32
    return %arg0, %arg1, %c0_i32, %c0_i32_0 : i32, i32, i32, i32
  }
  func.func @transform_3(%arg0: i32, %arg1: i32, %arg2: i32) -> (i32, i32, i32, i32) {
    %c0_i32 = arith.constant 0 : i32
    %c0_i32_0 = arith.constant 0 : i32
    %c0_i32_1 = arith.constant 0 : i32
    return %arg0, %arg1, %c0_i32, %c0_i32_0 : i32, i32, i32, i32
  }
  func.func @transform_4(%arg0: i32, %arg1: i32, %arg2: i32) -> (i32, i32, i32, i32) {
    %c0_i32 = arith.constant 0 : i32
    %c0_i32_0 = arith.constant 0 : i32
    %c0_i32_1 = arith.constant 0 : i32
    return %arg0, %arg1, %c0_i32, %c0_i32_0 : i32, i32, i32, i32
  }
}

module attributes {stable_mosaic.version = 11 : i64} {
  func.func @_project_kernel(%arg0: i32, %arg1: i32, %arg2: memref<8x4xf32, #tpu.memory_space<vmem>>, %arg3: memref<1x4x256xf32, #tpu.memory_space<vmem>>, %arg4: memref<1x8x256xf32, #tpu.memory_space<vmem>>) attributes {dimension_semantics = [#tpu.dimension_semantics<parallel>, #tpu.dimension_semantics<parallel>], iteration_bounds = array<i64: 2, 1>, scalar_prefetch = 0 : i64, scratch_operands = 0 : i64, tpu.core_type = #tpu.core_type<tc>, window_params = [{pipeline_mode = #tpu.pipeline_mode<synchronous>, transform_indices = @transform_0, window_bounds = array<i64: 8, 4>}, {transform_indices = @transform_1, window_bounds = array<i64: 1, 4, 256>}, {transform_indices = @transform_2, window_bounds = array<i64: 1, 8, 256>}]} {
    %c0 = arith.constant 0 : index
    %c0_0 = arith.constant 0 : index
    %0 = vector.load %arg2[%c0, %c0_0] : memref<8x4xf32, #tpu.memory_space<vmem>>, vector<8x4xf32>
    %c0_1 = arith.constant 0 : index
    %c0_2 = arith.constant 0 : index
    %c0_3 = arith.constant 0 : index
    %1 = vector.load %arg3[%c0_1, %c0_2, %c0_3] : memref<1x4x256xf32, #tpu.memory_space<vmem>>, vector<1x4x256xf32>
    %2 = vector.shape_cast %1 : vector<1x4x256xf32> to vector<4x256xf32>
    %cst = arith.constant dense<0.000000e+00> : vector<8x256xf32>
    %3 = tpu.matmul %0, %2, %cst {dimension_numbers = #tpu.dot_dimension_numbers<[1], [0], [0], [1], [0, 0, 1, 1], [], []>} : vector<8x4xf32>, vector<4x256xf32>, vector<8x256xf32> -> vector<8x256xf32>
    %c0_4 = arith.constant 0 : index
    %c0_5 = arith.constant 0 : index
    %c0_6 = arith.constant 0 : index
    %4 = vector.load %arg4[%c0_4, %c0_5, %c0_6] : memref<1x8x256xf32, #tpu.memory_space<vmem>>, vector<1x8x256xf32>
    %5 = vector.shape_cast %4 : vector<1x8x256xf32> to vector<8x256xf32>
    %6 = vector.shape_cast %3 : vector<8x256xf32> to vector<1x8x256xf32>
    tpu.vector_store %arg4[%c0_4, %c0_5, %c0_6], %6 {strides = array<i32>} : memref<1x8x256xf32, #tpu.memory_space<vmem>>, vector<1x8x256xf32>,
    return
  }
  func.func @transform_0(%arg0: i32, %arg1: i32) -> (i32, i32) {
    %c0_i32 = arith.constant 0 : i32
    %c0_i32_0 = arith.constant 0 : i32
    %c0_i32_1 = arith.constant 0 : i32
    return %c0_i32, %c0_i32_0 : i32, i32
  }
  func.func @transform_1(%arg0: i32, %arg1: i32) -> (i32, i32, i32) {
    %c0_i32 = arith.constant 0 : i32
    %c0_i32_0 = arith.constant 0 : i32
    return %arg0, %c0_i32, %arg1 : i32, i32, i32
  }
  func.func @transform_2(%arg0: i32, %arg1: i32) -> (i32, i32, i32) {
    %c0_i32 = arith.constant 0 : i32
    %c0_i32_0 = arith.constant 0 : i32
    return %arg0, %c0_i32, %arg1 : i32, i32, i32
  }
}

</mosaic_0001>

<llo_original>
// kernel: _forward_impl.2
$region0: #{_forward_impl.2}
  #allocation0 [shape = 'u32[]', space=smem, size = 0x4, offset = 0x4, fixed_abs, tag = 'smem constant byte address 0x4 - core index']
  #allocation1 [shape = 'u32[144,128]{1,0:T(1,128)}', space=vmem, size = 0x12000, scoped, tag = 'internal scratch']
  %s0 = inlined_call_operand.vmem [shape: f32[2,8,256], index: 0, kind: input, shape index: {}]
  %s1 = inlined_call_operand.vmem [shape: f32[2,4,256], index: 1, kind: input, shape index: {}]
  %s2 = inlined_call_operand.vmem [shape: f32[2,1,8,4], index: 2, kind: output, shape index: {0}]
  %s3 = inlined_call_operand.vmem [shape: f32[2,1,4,1], index: 3, kind: output, shape index: {1}]
  %s4 = inlined_call_operand.vmem [shape: f32[2,1,4,1], index: 4, kind: output, shape index: {2}]
  %5 = xla_tuple %s2, %s3, %s4
  %s6 = sld [smem:[#allocation0]]
  $region61: #{_forward_impl.2} parent=0
    _
  %s8 = ssub.s32 1, %s6
  %s9 = scalar_select 0, %s8, %s6
  loop: start=0, step=1, limit=4
  $region2: #{_forward_impl.2} parent=0 // loop_pre_header
    _
  $region3: #{_forward_impl.2} parent=0 // loop_header
    %s11 = sphi 0, %s15
    %p12 = scmp.ge.s32.totalorder %s11, 4
    %s18 = sphi 0, %s37
    %s19 = sphi 0, %s33
    %s20 = sphi 0, %s29
    %s21 = sphi 0, %s18
    %s22 = sphi 0, %s19
    %s23 = sphi 0, %s20
    %s24 = sphi 0, %s21
    %s25 = sphi 0, %s22
    %s26 = sphi 0, %s23
    %s44 = sphi 0, %s46
    %s47 = sphi 0, %s44
    %s48 = sphi 0, %s47
    %s64 = sphi 0, %s48
    %s74 = sphi 0, %s76
    %s77 = sphi 0, %s74
    %s78 = sphi 0, %s77
    %s94 = sphi 0, %s78
    %s102 = sphi 0, %s104
    %s105 = sphi 0, %s102
    %s106 = sphi 0, %s105
    %s122 = sphi 0, %s106
    %s130 = sphi 0, %s132
    %s133 = sphi 0, %s130
    %s134 = sphi 0, %s133
    %s150 = sphi 0, %s134
    %s158 = sphi 0, %s160
    %s161 = sphi 0, %s158
    %s162 = sphi 0, %s161
    %s178 = sphi 0, %s162
  $region4: #{_forward_impl.2} parent=0 // loop_header_branch
    %14 = sbr.rel (%p12) target = $region8
  $region5: #{_forward_impl.2} parent=0 // loop_body
    %s16 = ssub.s32 %s11, 1
    %s17 = ssub.s32 %s11, 2
    %s27 = sadd.s32 1, %s20
    %p28 = scmp.ge.s32.totalorder %s27, 1
    %s29 = scalar_select %p28, 0, %s27
    %s30 = sadd.s32 1, %s19
    %s31 = scalar_select %p28, %s30, %s19
    %p32 = scmp.ge.s32.totalorder %s31, 1
    %s33 = scalar_select %p32, 0, %s31
    %s34 = sadd.s32 1, %s18
    %s35 = scalar_select %p32, %s34, %s18
    %p36 = scmp.ge.s32.totalorder %s35, 2
    %s37 = scalar_select %p36, 0, %s35
    %s38 = sadd.s32 %s19, %s20
    %s39 = sadd.s32 %s33, %s29
    %s40 = ssub.s32 %s18, %s37
    %s41 = ssub.s32 %s38, %s39
    %s42 = sor.u32 %s40, %s41
    %p43 = scmp.eq.s32.totalorder %s42, 0
    %s45 = sadd.s32 %s44, 1
    %s46 = scalar_select %p43, %s44, %s45
    %p49 = pneg %p43
    %p50 = scmp.eq.s32.totalorder %s11, 1
    %p51 = por %p49, %p50
    %p52 = scmp.ne.s32.totalorder %s44, %s47
    %p53 = scmp.eq.s32.totalorder %s11, 0
    %p54 = por %p52, %p53
    %p55 = scmp.ne.s32.totalorder %s44, %s47
    %p56 = scmp.eq.s32.totalorder %s16, 1
    %p57 = por %p55, %p56
    %p58 = scmp.ne.s32.totalorder %s47, %s48
    %p59 = scmp.eq.s32.totalorder %s16, 0
    %p60 = por %p58, %p59
    %p61 = scmp.ne.s32.totalorder %s47, %s48
    %p62 = scmp.eq.s32.totalorder %s17, 1
    %p63 = por %p61, %p62
    %p65 = scmp.ne.s32.totalorder %s48, %s64
    %p66 = scmp.eq.s32.totalorder %s17, 0
    %p67 = por %p65, %p66
    %s68 = sadd.s32 %s19, %s20
    %s69 = sadd.s32 %s33, %s29
    %s70 = ssub.s32 %s18, %s37
    %s71 = ssub.s32 %s68, %s69
    %s72 = sor.u32 %s70, %s71
    %p73 = scmp.eq.s32.totalorder %s72, 0
    %s75 = sadd.s32 %s74, 1
    %s76 = scalar_select %p73, %s74, %s75
    %p79 = pneg %p73
    %p80 = scmp.eq.s32.totalorder %s11, 1
    %p81 = por %p79, %p80
    %p82 = scmp.ne.s32.totalorder %s74, %s77
    %p83 = scmp.eq.s32.totalorder %s11, 0
    %p84 = por %p82, %p83
    %p85 = scmp.ne.s32.totalorder %s74, %s77
    %p86 = scmp.eq.s32.totalorder %s16, 1
    %p87 = por %p85, %p86
    %p88 = scmp.ne.s32.totalorder %s77, %s78
    %p89 = scmp.eq.s32.totalorder %s16, 0
    %p90 = por %p88, %p89
    %p91 = scmp.ne.s32.totalorder %s77, %s78
    %p92 = scmp.eq.s32.totalorder %s17, 1
    %p93 = por %p91, %p92
    %p95 = scmp.ne.s32.totalorder %s78, %s94
    %p96 = scmp.eq.s32.totalorder %s17, 0
    %p97 = por %p95, %p96
    %s98 = ssub.s32 %s18, %s37
    %s99 = ssub.s32 %s19, %s33
    %s100 = sor.u32 %s98, %s99
    %p101 = scmp.eq.s32.totalorder %s100, 0
    %s103 = sadd.s32 %s102, 1
    %s104 = scalar_select %p101, %s102, %s103
    %p107 = pneg %p101
    %p108 = scmp.eq.s32.totalorder %s11, 1
    %p109 = por %p107, %p108
    %p110 = scmp.ne.s32.totalorder %s102, %s105
    %p111 = scmp.eq.s32.totalorder %s11, 0
    %p112 = por %p110, %p111
    %p113 = scmp.ne.s32.totalorder %s102, %s105
    %p114 = scmp.eq.s32.totalorder %s16, 1
    %p115 = por %p113, %p114
    %p116 = scmp.ne.s32.totalorder %s105, %s106
    %p117 = scmp.eq.s32.totalorder %s16, 0
    %p118 = por %p116, %p117
    %p119 = scmp.ne.s32.totalorder %s105, %s106
    %p120 = scmp.eq.s32.totalorder %s17, 1
    %p121 = por %p119, %p120
    %p123 = scmp.ne.s32.totalorder %s106, %s122
    %p124 = scmp.eq.s32.totalorder %s17, 0
    %p125 = por %p123, %p124
    %s126 = ssub.s32 %s18, %s37
    %s127 = ssub.s32 %s19, %s33
    %s128 = sor.u32 %s126, %s127
    %p129 = scmp.eq.s32.totalorder %s128, 0
    %s131 = sadd.s32 %s130, 1
    %s132 = scalar_select %p129, %s130, %s131
    %p135 = pneg %p129
    %p136 = scmp.eq.s32.totalorder %s11, 1
    %p137 = por %p135, %p136
    %p138 = scmp.ne.s32.totalorder %s130, %s133
    %p139 = scmp.eq.s32.totalorder %s11, 0
    %p140 = por %p138, %p139
    %p141 = scmp.ne.s32.totalorder %s130, %s133
    %p142 = scmp.eq.s32.totalorder %s16, 1
    %p143 = por %p141, %p142
    %p144 = scmp.ne.s32.totalorder %s133, %s134
    %p145 = scmp.eq.s32.totalorder %s16, 0
    %p146 = por %p144, %p145
    %p147 = scmp.ne.s32.totalorder %s133, %s134
    %p148 = scmp.eq.s32.totalorder %s17, 1
    %p149 = por %p147, %p148
    %p151 = scmp.ne.s32.totalorder %s134, %s150
    %p152 = scmp.eq.s32.totalorder %s17, 0
    %p153 = por %p151, %p152
    %s154 = ssub.s32 %s18, %s37
    %s155 = ssub.s32 %s19, %s33
    %s156 = sor.u32 %s154, %s155
    %p157 = scmp.eq.s32.totalorder %s156, 0
    %s159 = sadd.s32 %s158, 1
    %s160 = scalar_select %p157, %s158, %s159
    %p163 = pneg %p157
    %p164 = scmp.eq.s32.totalorder %s11, 1
    %p165 = por %p163, %p164
    %p166 = scmp.ne.s32.totalorder %s158, %s161
    %p167 = scmp.eq.s32.totalorder %s11, 0
    %p168 = por %p166, %p167
    %p169 = scmp.ne.s32.totalorder %s158, %s161
    %p170 = scmp.eq.s32.totalorder %s16, 1
    %p171 = por %p169, %p170
    %p172 = scmp.ne.s32.totalorder %s161, %s162
    %p173 = scmp.eq.s32.totalorder %s16, 0
    %p174 = por %p172, %p173
    %p175 = scmp.ne.s32.totalorder %s161, %s162
    %p176 = scmp.eq.s32.totalorder %s17, 1
    %p177 = por %p175, %p176
    %p179 = scmp.ne.s32.totalorder %s162, %s178
    %p180 = scmp.eq.s32.totalorder %s17, 0
    %p181 = por %p179, %p180
    %p182 = scmp.le.s32.totalorder 1, %s11
    %p183 = scmp.lt.s32.totalorder %s11, 3
    %p184 = pnand %p182, %p183
    %p185 = pneg %p184
    // Predicated region
    $region9: #{_forward_impl.2} parent=5 // pred_check
      _
    $region10: #{_forward_impl.2} parent=5 // pred_check_branch
      %187 = sbr.rel (%p184) target = $region12
    $region11: #{_forward_impl.2} parent=5 // pred_region
      %s188 = ssub.s32 %s11, 1
    $region12: #{_forward_impl.2} parent=5 // pred_fallthru
      _
    %p189 = scmp.lt.s32.totalorder %s11, 2
    // Predicated region
    $region13: #{_forward_impl.2} parent=5 // pred_check
      %p190 = pneg %p189
    $region14: #{_forward_impl.2} parent=5 // pred_check_branch
      %192 = sbr.rel (%p190) target = $region16
    $region15: #{_forward_impl.2} parent=5 // pred_region
      // Predicated region
      $region17: #{_forward_impl.2} parent=15 // pred_check
        %p193 = pneg %p54
      $region18: #{_forward_impl.2} parent=15 // pred_check_branch
        %195 = sbr.rel (%p193) target = $region20
      $region19: #{_forward_impl.2} parent=15 // pred_region
        %s196 = sadd.s32 %s19, %s20
        %s197 = smul.u32 2, %s196
        %p198 = scmp.lt.s32.totalorder %s18, 1
        %s199 = scalar_select %p198, %s18, 1
        %p200 = scmp.lt.s32.totalorder %s197, 1
        %s201 = scalar_select %p200, %s197, 1
        %s202 = smul.addr %s199, 2
        %s203 = sadd.s32 %s201, %s202
        %s204 = smul.addr %s203, 8
        %s205 = scalar_lea.vmem %s0, %s204
        %s206 = sadd.s32 %s19, %s20
        %s207 = smul.u32 2, %s206
      $region20: #{_forward_impl.2} parent=15 // pred_fallthru
        _
      // Predicated region
      $region21: #{_forward_impl.2} parent=15 // pred_check
        %p208 = pneg %p84
      $region22: #{_forward_impl.2} parent=15 // pred_check_branch
        %210 = sbr.rel (%p208) target = $region24
      $region23: #{_forward_impl.2} parent=15 // pred_region
        %s211 = sadd.s32 %s19, %s20
        %s212 = smul.u32 2, %s211
        %p213 = scmp.lt.s32.totalorder %s18, 1
        %s214 = scalar_select %p213, %s18, 1
        %p215 = scmp.lt.s32.totalorder %s212, 1
        %s216 = scalar_select %p215, %s212, 1
        %s217 = smul.addr %s214, 2
        %s218 = sadd.s32 %s216, %s217
        %s219 = smul.addr %s218, 4
        %s220 = scalar_lea.vmem %s1, %s219
        %s221 = sadd.s32 %s19, %s20
        %s222 = smul.u32 2, %s221
      $region24: #{_forward_impl.2} parent=15 // pred_fallthru
        _
    $region16: #{_forward_impl.2} parent=5 // pred_fallthru
      _
    %p223 = scmp.le.s32.totalorder 1, %s11
    %p224 = scmp.lt.s32.totalorder %s11, 3
    %p225 = pnand %p223, %p224
    %p226 = pneg %p225
    // Predicated region
    $region25: #{_forward_impl.2} parent=5 // pred_check
      _
    $region26: #{_forward_impl.2} parent=5 // pred_check_branch
      %228 = sbr.rel (%p225) target = $region28
    $region27: #{_forward_impl.2} parent=5 // pred_region
      %s229 = ssub.s32 %s11, 1
      %s230 = sadd.s32 %s22, %s23
      %s231 = smul.u32 2, %s230
      %p232 = scmp.lt.s32.totalorder %s21, 1
      %s233 = scalar_select %p232, %s21, 1
      %p234 = scmp.lt.s32.totalorder %s231, 1
      %s235 = scalar_select %p234, %s231, 1
      %s236 = smul.addr %s233, 2
      %s237 = sadd.s32 %s235, %s236
      %s238 = smul.addr %s237, 8
      %s239 = scalar_lea.vmem %s0, %s238
      %p240 = pneg %p60
      %p241 = pneg %p57
      %s242 = sadd.s32 %s22, %s23
      %s243 = smul.u32 2, %s242
      %p244 = scmp.lt.s32.totalorder %s21, 1
      %s245 = scalar_select %p244, %s21, 1
      %p246 = scmp.lt.s32.totalorder %s243, 1
      %s247 = scalar_select %p246, %s243, 1
      %s248 = smul.addr %s245, 2
      %s249 = sadd.s32 %s247, %s248
      %s250 = smul.addr %s249, 4
      %s251 = scalar_lea.vmem %s1, %s250
      %p252 = pneg %p90
      %p253 = pneg %p87
      %p254 = pneg %p118
      %p255 = pneg %p115
      %p256 = scmp.lt.s32.totalorder %s21, 1
      %s257 = scalar_select %p256, %s21, 1
      %p258 = scmp.lt.s32.totalorder %s22, 0
      %s259 = scalar_select %p258, %s22, 0
      %s260 = sadd.s32 %s259, %s257
      %s261 = smul.addr %s260, 8
      %s262 = scalar_lea.vmem %s2, %s261
      %p263 = pneg %p146
      %p264 = pneg %p143
      %p265 = scmp.lt.s32.totalorder %s21, 1
      %s266 = scalar_select %p265, %s21, 1
      %p267 = scmp.lt.s32.totalorder %s22, 0
      %s268 = scalar_select %p267, %s22, 0
      %s269 = sadd.s32 %s268, %s266
      %s270 = smul.addr %s269, 4
      %s271 = scalar_lea.vmem %s3, %s270
      %p272 = pneg %p174
      %p273 = pneg %p171
      %p274 = scmp.lt.s32.totalorder %s21, 1
      %s275 = scalar_select %p274, %s21, 1
      %p276 = scmp.lt.s32.totalorder %s22, 0
      %s277 = scalar_select %p276, %s22, 0
      %s278 = sadd.s32 %s277, %s275
      %s279 = smul.addr %s278, 4
      %s280 = scalar_lea.vmem %s4, %s279
      %s281 = sadd.s32 %s22, %s23
      %s282 = smul.u32 2, %s281
      %p283 = scmp.lt.s32.totalorder %s21, 1
      %s284 = scalar_select %p283, %s21, 1
      %p285 = scmp.lt.s32.totalorder %s282, 1
      %s286 = scalar_select %p285, %s282, 1
      %s287 = smul.addr %s284, 2
      %s288 = sadd.s32 %s286, %s287
      %s289 = smul.addr %s288, 8
      %s290 = scalar_lea.vmem %s0, %s289
      %s291 = sadd.s32 %s22, %s23
      %s292 = smul.u32 2, %s291
      %s293 = sadd.s32 %s22, %s23
      %s294 = smul.u32 2, %s293
      %p295 = scmp.lt.s32.totalorder %s21, 1
      %s296 = scalar_select %p295, %s21, 1
      %p297 = scmp.lt.s32.totalorder %s294, 1
      %s298 = scalar_select %p297, %s294, 1
      %s299 = smul.addr %s296, 2
      %s300 = sadd.s32 %s298, %s299
      %s301 = smul.addr %s300, 4
      %s302 = scalar_lea.vmem %s1, %s301
      %s303 = sadd.s32 %s22, %s23
      %s304 = smul.u32 2, %s303
      %p305 = scmp.lt.s32.totalorder %s21, 1
      %s306 = scalar_select %p305, %s21, 1
      %p307 = scmp.lt.s32.totalorder %s22, 0
      %s308 = scalar_select %p307, %s22, 0
      %s309 = sadd.s32 %s308, %s306
      %s310 = smul.addr %s309, 8
      %s311 = scalar_lea.vmem %s2, %s310
      %p312 = scmp.lt.s32.totalorder %s21, 1
      %s313 = scalar_select %p312, %s21, 1
      %p314 = scmp.lt.s32.totalorder %s22, 0
      %s315 = scalar_select %p314, %s22, 0
      %s316 = sadd.s32 %s315, %s313
      %s317 = smul.addr %s316, 4
      %s318 = scalar_lea.vmem %s3, %s317
      %p319 = scmp.lt.s32.totalorder %s21, 1
      %s320 = scalar_select %p319, %s21, 1
      %p321 = scmp.lt.s32.totalorder %s22, 0
      %s322 = scalar_select %p321, %s22, 0
      %s323 = sadd.s32 %s322, %s320
      %s324 = smul.addr %s323, 4
      %s325 = scalar_lea.vmem %s4, %s324
      %p326 = scmp.eq.s32.totalorder %s23, 0
      // Predicated region
      $region29: #{_forward_impl.2} parent=27 // pred_check
        %p327 = pneg %p326
      $region30: #{_forward_impl.2} parent=27 // pred_check_branch
        %329 = sbr.rel (%p327) target = $region32
      $region31: #{_forward_impl.2} parent=27 // pred_region
        %vm330 = vcmask 31744
        %331 = vst.msk [vmem:[%s311] sm:$0xff] %vm330, 0.0
        %vm332 = vcmask 3072
        %333 = vst.msk [vmem:[%s318] sm:$0xf] %vm332, 0.0
        %334 = vst.msk [vmem:[%s325] sm:$0xf] %vm332, -inf
      $region32: #{_forward_impl.2} parent=27 // pred_fallthru
        _
      %v335 = vld [vmem:[%s290] sm:$0xff]
      %v336 = vld [vmem:[%s290 + $0x8] sm:$0xff]
      %v337 = vld [vmem:[%s302] sm:$0xff]
      %v338 = vld [vmem:[%s311] sm:$0xff]
      %v340 = vcombine.high %v337, %v337
      %342 = vmatprep.subr.mxu0 0.0
      %343 = vmatpush1.xpose.msra.mxu0 0.0
      %344 = vmatprep.subr.mxu0 0.0
      %345 = vmatpush1.xpose.msra.mxu0 0.0
      %346 = vmatprep.subr.mxu0 0.0
      %347 = vmatpush1.xpose.msra.mxu0 0.0
      %348 = vmatprep.subr.mxu0 0.0
      %349 = vmatpush1.xpose.msra.mxu0 0.0
      %350 = vmatprep.subr.mxu0 0.0
      %351 = vmatpush1.xpose.msra.mxu0 0.0
      %352 = vmatprep.subr.mxu0 0.0
      %353 = vmatpush1.xpose.msra.mxu0 0.0
      %354 = vmatprep.subr.mxu0 0.0
      %355 = vmatpush1.xpose.msra.mxu0 0.0
      %356 = vmatprep.subr.mxu0 0.0
      %357 = vmatpush1.xpose.msra.mxu0 0.0
      %358 = vmatprep.subr.mxu0 0.0
      %359 = vmatpush1.xpose.msra.mxu0 0.0
      %360 = vmatprep.subr.mxu0 0.0
      %361 = vmatpush1.xpose.msra.mxu0 0.0
      %362 = vmatprep.subr.mxu0 0.0
      %363 = vmatpush1.xpose.msra.mxu0 0.0
      %364 = vmatprep.subr.mxu0 0.0
      %365 = vmatpush1.xpose.msra.mxu0 0.0
      %366 = vmatprep.subr.mxu0 0.0
      %367 = vmatpush1.xpose.msra.mxu0 0.0
      %368 = vmatprep.subr.mxu0 0.0
      %369 = vmatpush1.xpose.msra.mxu0 0.0
      %370 = vmatprep.subr.mxu0 0.0
      %371 = vmatpush1.xpose.msra.mxu0 0.0
      %372 = vmatprep.subr.mxu0 %v340
      %373 = vmatpush1.xpose.msra.mxu0 %v337
      %374 = vmatprep.subr.mxu0 0.0
      %375 = vmatpush2.xpose.msra.mxu0 0.0
      %376 = vmatprep.subr.mxu0 0.0
      %377 = vmatpush2.xpose.msra.mxu0 0.0
      %378 = vmatprep.subr.mxu0 0.0
      %379 = vmatpush2.xpose.msra.mxu0 0.0
      %380 = vmatprep.subr.mxu0 0.0
      %381 = vmatpush2.xpose.msra.mxu0 0.0
      %382 = vmatprep.subr.mxu0 0.0
      %383 = vmatpush2.xpose.msra.mxu0 0.0
      %384 = vmatprep.subr.mxu0 0.0
      %385 = vmatpush2.xpose.msra.mxu0 0.0
      %386 = vmatprep.subr.mxu0 0.0
      %387 = vmatpush2.xpose.msra.mxu0 0.0
      %388 = vmatprep.subr.mxu0 0.0
      %389 = vmatpush2.xpose.msra.mxu0 0.0
      %390 = vmatprep.subr.mxu0 0.0
      %391 = vmatpush2.xpose.msra.mxu0 0.0
      %392 = vmatprep.subr.mxu0 0.0
      %393 = vmatpush2.xpose.msra.mxu0 0.0
      %394 = vmatprep.subr.mxu0 0.0
      %395 = vmatpush2.xpose.msra.mxu0 0.0
      %396 = vmatprep.subr.mxu0 0.0
      %397 = vmatpush2.xpose.msra.mxu0 0.0
      %398 = vmatprep.subr.mxu0 0.0
      %399 = vmatpush2.xpose.msra.mxu0 0.0
      %400 = vmatprep.subr.mxu0 0.0
      %401 = vmatpush2.xpose.msra.mxu0 0.0
      %402 = vmatprep.subr.mxu0 0.0
      %403 = vmatpush2.xpose.msra.mxu0 0.0
      %404 = vmatprep.subr.mxu0 0.0
      %405 = vmatpush2.xpose.msra.mxu0 0.0
      %406 = vmatprep.mubr.f32.mxu0 %v336
      %407 = vmatmul.mubr.f32.gmra.mxu0 %v335
      %v408 = vpop.f32.mrf.mxu0
      %v409 = vadd.f32 0.0, %v408
      %v410 = vpop.f32.mrf.mxu0
      %411 = vdwg.mxu0
      %v412 = vadd.f32 %v338, %v409
      %vm413 = vcmask 31744
      %414 = vst.msk [vmem:[%s311] sm:$0xff] %vm413, %v412
      %v415 = vld [vmem:[%s318] sm:$0xf]
      %vm416 = vcmask 1043456
      %v417 = vsel %vm416, %v337, 0.0
      %v418 = vsel %vm416, %v340, 0.0
      %v419 = vadd.f32 %v417, %v418
      %420 = vadd.xlane.f32.xlu0 %v419
      %v421 = vpop.xlane.xlu0 %420
      %v422 = vadd.f32 %v415, %v421
      %vm423 = vcmask 3072
      %424 = vst.msk [vmem:[%s318] sm:$0xf] %vm423, %v422
      %v425 = vld [vmem:[%s325] sm:$0xf]
      %v426 = vsel %vm416, %v337, -inf
      %v427 = vsel %vm416, %v340, -inf
      %v428 = vmax.f32 %v426, %v427
      %429 = vmax.xlane.f32.xlu0 %v428
      %v430 = vpop.xlane.xlu0 %429
      %v431 = vmax.f32 %v425, %v430
      %432 = vst.msk [vmem:[%s325] sm:$0xf] %vm423, %v431
      %p433 = scmp.lt.s32.totalorder %s21, 1
      %s434 = scalar_select %p433, %s21, 1
      %p435 = scmp.lt.s32.totalorder %s22, 0
      %s436 = scalar_select %p435, %s22, 0
      %s437 = sadd.s32 %s436, %s434
      %s438 = smul.addr %s437, 8
      %s439 = scalar_lea.vmem %s2, %s438
      %p440 = scmp.lt.s32.totalorder %s21, 1
      %s441 = scalar_select %p440, %s21, 1
      %p442 = scmp.lt.s32.totalorder %s22, 0
      %s443 = scalar_select %p442, %s22, 0
      %s444 = sadd.s32 %s443, %s441
      %s445 = smul.addr %s444, 4
      %s446 = scalar_lea.vmem %s3, %s445
      %p447 = scmp.lt.s32.totalorder %s21, 1
      %s448 = scalar_select %p447, %s21, 1
      %p449 = scmp.lt.s32.totalorder %s22, 0
      %s450 = scalar_select %p449, %s22, 0
      %s451 = sadd.s32 %s450, %s448
      %s452 = smul.addr %s451, 4
      %s453 = scalar_lea.vmem %s4, %s452
      // Predicated region
      $region33: #{_forward_impl.2} parent=27 // pred_check
        %p454 = pneg %p115
      $region34: #{_forward_impl.2} parent=27 // pred_check_branch
        %456 = sbr.rel (%p454) target = $region36
      $region35: #{_forward_impl.2} parent=27 // pred_region
        _
      $region36: #{_forward_impl.2} parent=27 // pred_fallthru
        _
      // Predicated region
      $region37: #{_forward_impl.2} parent=27 // pred_check
        %p457 = pneg %p143
      $region38: #{_forward_impl.2} parent=27 // pred_check_branch
        %459 = sbr.rel (%p457) target = $region40
      $region39: #{_forward_impl.2} parent=27 // pred_region
        _
      $region40: #{_forward_impl.2} parent=27 // pred_fallthru
        _
      // Predicated region
      $region41: #{_forward_impl.2} parent=27 // pred_check
        %p460 = pneg %p171
      $region42: #{_forward_impl.2} parent=27 // pred_check_branch
        %462 = sbr.rel (%p460) target = $region44
      $region43: #{_forward_impl.2} parent=27 // pred_region
        _
      $region44: #{_forward_impl.2} parent=27 // pred_fallthru
        _
    $region28: #{_forward_impl.2} parent=5 // pred_fallthru
      _
    %p463 = scmp.le.s32.totalorder 2, %s11
    // Predicated region
    $region45: #{_forward_impl.2} parent=5 // pred_check
      %p464 = pneg %p463
    $region46: #{_forward_impl.2} parent=5 // pred_check_branch
      %466 = sbr.rel (%p464) target = $region48
    $region47: #{_forward_impl.2} parent=5 // pred_region
      %s467 = ssub.s32 %s11, 2
      // Predicated region
      $region49: #{_forward_impl.2} parent=47 // pred_check
        %p468 = pneg %p121
      $region50: #{_forward_impl.2} parent=47 // pred_check_branch
        %470 = sbr.rel (%p468) target = $region52
      $region51: #{_forward_impl.2} parent=47 // pred_region
        %p471 = scmp.lt.s32.totalorder %s24, 1
        %s472 = scalar_select %p471, %s24, 1
        %p473 = scmp.lt.s32.totalorder %s25, 0
        %s474 = scalar_select %p473, %s25, 0
        %s475 = sadd.s32 %s474, %s472
        %s476 = smul.addr %s475, 8
        %s477 = scalar_lea.vmem %s2, %s476
      $region52: #{_forward_impl.2} parent=47 // pred_fallthru
        _
      // Predicated region
      $region53: #{_forward_impl.2} parent=47 // pred_check
        %p478 = pneg %p149
      $region54: #{_forward_impl.2} parent=47 // pred_check_branch
        %480 = sbr.rel (%p478) target = $region56
      $region55: #{_forward_impl.2} parent=47 // pred_region
        %p481 = scmp.lt.s32.totalorder %s24, 1
        %s482 = scalar_select %p481, %s24, 1
        %p483 = scmp.lt.s32.totalorder %s25, 0
        %s484 = scalar_select %p483, %s25, 0
        %s485 = sadd.s32 %s484, %s482
        %s486 = smul.addr %s485, 4
        %s487 = scalar_lea.vmem %s3, %s486
      $region56: #{_forward_impl.2} parent=47 // pred_fallthru
        _
      // Predicated region
      $region57: #{_forward_impl.2} parent=47 // pred_check
        %p488 = pneg %p177
      $region58: #{_forward_impl.2} parent=47 // pred_check_branch
        %490 = sbr.rel (%p488) target = $region60
      $region59: #{_forward_impl.2} parent=47 // pred_region
        %p491 = scmp.lt.s32.totalorder %s24, 1
        %s492 = scalar_select %p491, %s24, 1
        %p493 = scmp.lt.s32.totalorder %s25, 0
        %s494 = scalar_select %p493, %s25, 0
        %s495 = sadd.s32 %s494, %s492
        %s496 = smul.addr %s495, 4
        %s497 = scalar_lea.vmem %s4, %s496
      $region60: #{_forward_impl.2} parent=47 // pred_fallthru
        _
    $region48: #{_forward_impl.2} parent=5 // pred_fallthru
      _
  $region6: #{_forward_impl.2} parent=0 // loop_footer
    %s15 = sadd.s32 1, %s11
  $region7: #{_forward_impl.2} parent=0 // loop_footer_branch
    %10 = sbr.rel target = $region3
  $region8: #{_forward_impl.2} parent=0 // loop_exit
    _

// kernel: _forward_impl.3
$region0: #{_forward_impl.3}
  #allocation0 [shape = 'u32[]', space=smem, size = 0x4, offset = 0x4, fixed_abs, tag = 'smem constant byte address 0x4 - core index']
  #allocation1 [shape = 'u32[144,128]{1,0:T(1,128)}', space=vmem, size = 0x12000, scoped, tag = 'internal scratch']
  %s0 = inlined_call_operand.vmem [shape: f32[8,4], index: 0, kind: input, shape index: {}]
  %s1 = inlined_call_operand.vmem [shape: f32[2,4,256], index: 1, kind: input, shape index: {}]
  %s2 = inlined_call_operand.vmem [shape: f32[2,8,256], index: 2, kind: output, shape index: {}]
  %s3 = sld [smem:[#allocation0]]
  $region41: #{_forward_impl.3} parent=0
    _
  %s5 = ssub.s32 1, %s3
  %s6 = scalar_select 0, %s5, %s3
  loop: start=0, step=1, limit=4
  $region2: #{_forward_impl.3} parent=0 // loop_pre_header
    _
  $region3: #{_forward_impl.3} parent=0 // loop_header
    %s8 = sphi 0, %s12
    %p9 = scmp.ge.s32.totalorder %s8, 4
    %s15 = sphi 0, %s27
    %s16 = sphi 0, %s23
    %s17 = sphi 0, %s15
    %s18 = sphi 0, %s16
    %s19 = sphi 0, %s17
    %s20 = sphi 0, %s18
    %s28 = sphi 0, %s28
    %s30 = sphi 0, %s28
    %s31 = sphi 0, %s30
    %s45 = sphi 0, %s31
    %s53 = sphi 0, %s55
    %s56 = sphi 0, %s53
    %s57 = sphi 0, %s56
    %s73 = sphi 0, %s57
    %s81 = sphi 0, %s83
    %s84 = sphi 0, %s81
    %s85 = sphi 0, %s84
    %s101 = sphi 0, %s85
  $region4: #{_forward_impl.3} parent=0 // loop_header_branch
    %11 = sbr.rel (%p9) target = $region8
  $region5: #{_forward_impl.3} parent=0 // loop_body
    %s13 = ssub.s32 %s8, 1
    %s14 = ssub.s32 %s8, 2
    %s21 = sadd.s32 1, %s16
    %p22 = scmp.ge.s32.totalorder %s21, 1
    %s23 = scalar_select %p22, 0, %s21
    %s24 = sadd.s32 1, %s15
    %s25 = scalar_select %p22, %s24, %s15
    %p26 = scmp.ge.s32.totalorder %s25, 2
    %s27 = scalar_select %p26, 0, %s25
    %s29 = sadd.s32 %s28, 1
    %p32 = scmp.eq.s32.totalorder %s8, 1
    %p33 = scmp.ne.s32.totalorder %s28, %s30
    %p34 = scmp.eq.s32.totalorder %s8, 0
    %p35 = por %p33, %p34
    %p36 = scmp.ne.s32.totalorder %s28, %s30
    %p37 = scmp.eq.s32.totalorder %s13, 1
    %p38 = por %p36, %p37
    %p39 = scmp.ne.s32.totalorder %s30, %s31
    %p40 = scmp.eq.s32.totalorder %s13, 0
    %p41 = por %p39, %p40
    %p42 = scmp.ne.s32.totalorder %s30, %s31
    %p43 = scmp.eq.s32.totalorder %s14, 1
    %p44 = por %p42, %p43
    %p46 = scmp.ne.s32.totalorder %s31, %s45
    %p47 = scmp.eq.s32.totalorder %s14, 0
    %p48 = por %p46, %p47
    %s49 = ssub.s32 %s15, %s27
    %s50 = ssub.s32 %s16, %s23
    %s51 = sor.u32 %s49, %s50
    %p52 = scmp.eq.s32.totalorder %s51, 0
    %s54 = sadd.s32 %s53, 1
    %s55 = scalar_select %p52, %s53, %s54
    %p58 = pneg %p52
    %p59 = scmp.eq.s32.totalorder %s8, 1
    %p60 = por %p58, %p59
    %p61 = scmp.ne.s32.totalorder %s53, %s56
    %p62 = scmp.eq.s32.totalorder %s8, 0
    %p63 = por %p61, %p62
    %p64 = scmp.ne.s32.totalorder %s53, %s56
    %p65 = scmp.eq.s32.totalorder %s13, 1
    %p66 = por %p64, %p65
    %p67 = scmp.ne.s32.totalorder %s56, %s57
    %p68 = scmp.eq.s32.totalorder %s13, 0
    %p69 = por %p67, %p68
    %p70 = scmp.ne.s32.totalorder %s56, %s57
    %p71 = scmp.eq.s32.totalorder %s14, 1
    %p72 = por %p70, %p71
    %p74 = scmp.ne.s32.totalorder %s57, %s73
    %p75 = scmp.eq.s32.totalorder %s14, 0
    %p76 = por %p74, %p75
    %s77 = ssub.s32 %s15, %s27
    %s78 = ssub.s32 %s16, %s23
    %s79 = sor.u32 %s77, %s78
    %p80 = scmp.eq.s32.totalorder %s79, 0
    %s82 = sadd.s32 %s81, 1
    %s83 = scalar_select %p80, %s81, %s82
    %p86 = pneg %p80
    %p87 = scmp.eq.s32.totalorder %s8, 1
    %p88 = por %p86, %p87
    %p89 = scmp.ne.s32.totalorder %s81, %s84
    %p90 = scmp.eq.s32.totalorder %s8, 0
    %p91 = por %p89, %p90
    %p92 = scmp.ne.s32.totalorder %s81, %s84
    %p93 = scmp.eq.s32.totalorder %s13, 1
    %p94 = por %p92, %p93
    %p95 = scmp.ne.s32.totalorder %s84, %s85
    %p96 = scmp.eq.s32.totalorder %s13, 0
    %p97 = por %p95, %p96
    %p98 = scmp.ne.s32.totalorder %s84, %s85
    %p99 = scmp.eq.s32.totalorder %s14, 1
    %p100 = por %p98, %p99
    %p102 = scmp.ne.s32.totalorder %s85, %s101
    %p103 = scmp.eq.s32.totalorder %s14, 0
    %p104 = por %p102, %p103
    %p105 = scmp.le.s32.totalorder 1, %s8
    %p106 = scmp.lt.s32.totalorder %s8, 3
    %p107 = pnand %p105, %p106
    %p108 = pneg %p107
    // Predicated region
    $region9: #{_forward_impl.3} parent=5 // pred_check
      _
    $region10: #{_forward_impl.3} parent=5 // pred_check_branch
      %110 = sbr.rel (%p107) target = $region12
    $region11: #{_forward_impl.3} parent=5 // pred_region
      %s111 = ssub.s32 %s8, 1
      // Predicated region
      $region13: #{_forward_impl.3} parent=11 // pred_check
        %p112 = pneg %p41
      $region14: #{_forward_impl.3} parent=11 // pred_check_branch
        %114 = sbr.rel (%p112) target = $region16
      $region15: #{_forward_impl.3} parent=11 // pred_region
        _
      $region16: #{_forward_impl.3} parent=11 // pred_fallthru
        _
    $region12: #{_forward_impl.3} parent=5 // pred_fallthru
      _
    %p115 = scmp.lt.s32.totalorder %s8, 2
    // Predicated region
    $region17: #{_forward_impl.3} parent=5 // pred_check
      %p116 = pneg %p115
    $region18: #{_forward_impl.3} parent=5 // pred_check_branch
      %118 = sbr.rel (%p116) target = $region20
    $region19: #{_forward_impl.3} parent=5 // pred_region
      // Predicated region
      $region21: #{_forward_impl.3} parent=19 // pred_check
        %p119 = pneg %p63
      $region22: #{_forward_impl.3} parent=19 // pred_check_branch
        %121 = sbr.rel (%p119) target = $region24
      $region23: #{_forward_impl.3} parent=19 // pred_region
        %s122 = smul.u32 2, %s16
        %p123 = scmp.lt.s32.totalorder %s15, 1
        %s124 = scalar_select %p123, %s15, 1
        %p125 = scmp.lt.s32.totalorder %s122, 1
        %s126 = scalar_select %p125, %s122, 1
        %s127 = smul.addr %s124, 2
        %s128 = sadd.s32 %s126, %s127
        %s129 = smul.addr %s128, 4
        %s130 = scalar_lea.vmem %s1, %s129
        %s131 = smul.u32 2, %s16
      $region24: #{_forward_impl.3} parent=19 // pred_fallthru
        _
    $region20: #{_forward_impl.3} parent=5 // pred_fallthru
      _
    %p132 = scmp.le.s32.totalorder 1, %s8
    %p133 = scmp.lt.s32.totalorder %s8, 3
    %p134 = pnand %p132, %p133
    %p135 = pneg %p134
    // Predicated region
    $region25: #{_forward_impl.3} parent=5 // pred_check
      _
    $region26: #{_forward_impl.3} parent=5 // pred_check_branch
      %137 = sbr.rel (%p134) target = $region28
    $region27: #{_forward_impl.3} parent=5 // pred_region
      %s138 = ssub.s32 %s8, 1
      %p139 = pneg %p41
      %p140 = pneg %p38
      %s141 = smul.u32 2, %s18
      %p142 = scmp.lt.s32.totalorder %s17, 1
      %s143 = scalar_select %p142, %s17, 1
      %p144 = scmp.lt.s32.totalorder %s141, 1
      %s145 = scalar_select %p144, %s141, 1
      %s146 = smul.addr %s143, 2
      %s147 = sadd.s32 %s145, %s146
      %s148 = smul.addr %s147, 4
      %s149 = scalar_lea.vmem %s1, %s148
      %p150 = pneg %p69
      %p151 = pneg %p66
      %p152 = pneg %p97
      %p153 = pneg %p94
      %s154 = smul.u32 2, %s18
      %p155 = scmp.lt.s32.totalorder %s17, 1
      %s156 = scalar_select %p155, %s17, 1
      %p157 = scmp.lt.s32.totalorder %s154, 1
      %s158 = scalar_select %p157, %s154, 1
      %s159 = smul.addr %s156, 2
      %s160 = sadd.s32 %s158, %s159
      %s161 = smul.addr %s160, 8
      %s162 = scalar_lea.vmem %s2, %s161
      %s163 = smul.u32 2, %s18
      %p164 = scmp.lt.s32.totalorder %s17, 1
      %s165 = scalar_select %p164, %s17, 1
      %p166 = scmp.lt.s32.totalorder %s163, 1
      %s167 = scalar_select %p166, %s163, 1
      %s168 = smul.addr %s165, 2
      %s169 = sadd.s32 %s167, %s168
      %s170 = smul.addr %s169, 4
      %s171 = scalar_lea.vmem %s1, %s170
      %s172 = smul.u32 2, %s18
      %s173 = smul.u32 2, %s18
      %p174 = scmp.lt.s32.totalorder %s17, 1
      %s175 = scalar_select %p174, %s17, 1
      %p176 = scmp.lt.s32.totalorder %s173, 1
      %s177 = scalar_select %p176, %s173, 1
      %s178 = smul.addr %s175, 2
      %s179 = sadd.s32 %s177, %s178
      %s180 = smul.addr %s179, 8
      %s181 = scalar_lea.vmem %s2, %s180
      %s182 = smul.u32 2, %s18
      %v183 = vld [vmem:[%s0] sm:$0xff]
      %v184 = vld [vmem:[%s171] sm:$0xff]
      %v186 = vcombine.high %v184, %v184
      %vm187 = vcmask 31744
      %v189 = vsel %vm187, %v183, 0
      %vm191 = vcmask 1043456
      %v192 = vsel %vm191, %v184, 0
      %v194 = vsel %vm191, %v186, 0
      %196 = vmatprep.subr.mxu0 0.0
      %197 = vmatpush1.msra.mxu0 0.0
      %198 = vmatprep.subr.mxu0 0.0
      %199 = vmatpush1.msra.mxu0 0.0
      %200 = vmatprep.subr.mxu0 0.0
      %201 = vmatpush1.msra.mxu0 0.0
      %202 = vmatprep.subr.mxu0 0.0
      %203 = vmatpush1.msra.mxu0 0.0
      %204 = vmatprep.subr.mxu0 0.0
      %205 = vmatpush1.msra.mxu0 0.0
      %206 = vmatprep.subr.mxu0 0.0
      %207 = vmatpush1.msra.mxu0 0.0
      %208 = vmatprep.subr.mxu0 0.0
      %209 = vmatpush1.msra.mxu0 0.0
      %210 = vmatprep.subr.mxu0 0.0
      %211 = vmatpush1.msra.mxu0 0.0
      %212 = vmatprep.subr.mxu0 0.0
      %213 = vmatpush1.msra.mxu0 0.0
      %214 = vmatprep.subr.mxu0 0.0
      %215 = vmatpush1.msra.mxu0 0.0
      %216 = vmatprep.subr.mxu0 0.0
      %217 = vmatpush1.msra.mxu0 0.0
      %218 = vmatprep.subr.mxu0 0.0
      %219 = vmatpush1.msra.mxu0 0.0
      %220 = vmatprep.subr.mxu0 0.0
      %221 = vmatpush1.msra.mxu0 0.0
      %222 = vmatprep.subr.mxu0 0.0
      %223 = vmatpush1.msra.mxu0 0.0
      %224 = vmatprep.subr.mxu0 0.0
      %225 = vmatpush1.msra.mxu0 0.0
      %226 = vmatprep.subr.mxu0 %v194
      %227 = vmatpush1.msra.mxu0 %v192
      %228 = vmatprep.subr.mxu0 0.0
      %229 = vmatpush2.msra.mxu0 0.0
      %230 = vmatprep.subr.mxu0 0.0
      %231 = vmatpush2.msra.mxu0 0.0
      %232 = vmatprep.subr.mxu0 0.0
      %233 = vmatpush2.msra.mxu0 0.0
      %234 = vmatprep.subr.mxu0 0.0
      %235 = vmatpush2.msra.mxu0 0.0
      %236 = vmatprep.subr.mxu0 0.0
      %237 = vmatpush2.msra.mxu0 0.0
      %238 = vmatprep.subr.mxu0 0.0
      %239 = vmatpush2.msra.mxu0 0.0
      %240 = vmatprep.subr.mxu0 0.0
      %241 = vmatpush2.msra.mxu0 0.0
      %242 = vmatprep.subr.mxu0 0.0
      %243 = vmatpush2.msra.mxu0 0.0
      %244 = vmatprep.subr.mxu0 0.0
      %245 = vmatpush2.msra.mxu0 0.0
      %246 = vmatprep.subr.mxu0 0.0
      %247 = vmatpush2.msra.mxu0 0.0
      %248 = vmatprep.subr.mxu0 0.0
      %249 = vmatpush2.msra.mxu0 0.0
      %250 = vmatprep.subr.mxu0 0.0
      %251 = vmatpush2.msra.mxu0 0.0
      %252 = vmatprep.subr.mxu0 0.0
      %253 = vmatpush2.msra.mxu0 0.0
      %254 = vmatprep.subr.mxu0 0.0
      %255 = vmatpush2.msra.mxu0 0.0
      %256 = vmatprep.subr.mxu0 0.0
      %257 = vmatpush2.msra.mxu0 0.0
      %258 = vmatprep.subr.mxu0 0.0
      %259 = vmatpush2.msra.mxu0 0.0
      %260 = vmatprep.mubr.f32.mxu0 0.0
      %261 = vmatmul.mubr.f32.gmra.mxu0 %v189
      %v262 = vpop.f32.mrf.mxu0
      %v263 = vadd.f32 0.0, %v262
      %v264 = vpop.f32.mrf.mxu0
      %v265 = vadd.f32 0.0, %v264
      %266 = vdwg.mxu0
      %267 = vst [vmem:[%s181] sm:$0xff] %v263
      %268 = vst [vmem:[%s181 + $0x8] sm:$0xff] %v265
      %s269 = smul.u32 2, %s18
      %p270 = scmp.lt.s32.totalorder %s17, 1
      %s271 = scalar_select %p270, %s17, 1
      %p272 = scmp.lt.s32.totalorder %s269, 1
      %s273 = scalar_select %p272, %s269, 1
      %s274 = smul.addr %s271, 2
      %s275 = sadd.s32 %s273, %s274
      %s276 = smul.addr %s275, 8
      %s277 = scalar_lea.vmem %s2, %s276
      // Predicated region
      $region29: #{_forward_impl.3} parent=27 // pred_check
        %p278 = pneg %p94
      $region30: #{_forward_impl.3} parent=27 // pred_check_branch
        %280 = sbr.rel (%p278) target = $region32
      $region31: #{_forward_impl.3} parent=27 // pred_region
        %s281 = smul.u32 2, %s18
      $region32: #{_forward_impl.3} parent=27 // pred_fallthru
        _
    $region28: #{_forward_impl.3} parent=5 // pred_fallthru
      _
    %p282 = scmp.le.s32.totalorder 2, %s8
    // Predicated region
    $region33: #{_forward_impl.3} parent=5 // pred_check
      %p283 = pneg %p282
    $region34: #{_forward_impl.3} parent=5 // pred_check_branch
      %285 = sbr.rel (%p283) target = $region36
    $region35: #{_forward_impl.3} parent=5 // pred_region
      %s286 = ssub.s32 %s8, 2
      // Predicated region
      $region37: #{_forward_impl.3} parent=35 // pred_check
        %p287 = pneg %p100
      $region38: #{_forward_impl.3} parent=35 // pred_check_branch
        %289 = sbr.rel (%p287) target = $region40
      $region39: #{_forward_impl.3} parent=35 // pred_region
        %s290 = smul.u32 2, %s20
        %p291 = scmp.lt.s32.totalorder %s19, 1
        %s292 = scalar_select %p291, %s19, 1
        %p293 = scmp.lt.s32.totalorder %s290, 1
        %s294 = scalar_select %p293, %s290, 1
        %s295 = smul.addr %s292, 2
        %s296 = sadd.s32 %s294, %s295
        %s297 = smul.addr %s296, 8
        %s298 = scalar_lea.vmem %s2, %s297
      $region40: #{_forward_impl.3} parent=35 // pred_fallthru
        _
    $region36: #{_forward_impl.3} parent=5 // pred_fallthru
      _
  $region6: #{_forward_impl.3} parent=0 // loop_footer
    %s12 = sadd.s32 1, %s8
  $region7: #{_forward_impl.3} parent=0 // loop_footer_branch
    %7 = sbr.rel target = $region3
  $region8: #{_forward_impl.3} parent=0 // loop_exit
    _

</llo_original>
